<compile_context>
chip_gen: v6e
topology: v6e:2x2x1
jax: 0.10.0
libtpu: 0.0.40
codegen_flags: <defaults>
</compile_context>

<pallas_src>
import functools

import jax
import jax.numpy as jnp
from jax.experimental import pallas as pl
from jax.experimental.pallas import tpu as pltpu


def _round_up(x, m):
    return (x + m - 1) // m * m


def _cdiv(a, b):
    return -(-a // b)


def _vmem_budget_bytes():
    """(pipelined-buffer budget, vmem_limit cap) per TPU generation."""
    cap = None
    try:
        cap = int(pltpu.get_tpu_info().vmem_capacity_bytes)
    except Exception:
        cap = None
    if cap is not None and cap >= 120 * (1 << 20):
        # v5e / v6e: 128 MiB physical VMEM per TensorCore.
        return 80 * (1 << 20), 100 * (1 << 20)
    # v7x (64 MiB per TensorCore) or unknown: stay conservative.
    return 40 * (1 << 20), 60 * (1 << 20)


def _gram_kernel(feat_ref, g_ref, *, k_total, tk, kt_per_split, num_k_tiles,
                 needs_mask, cast_bf16):
    """Accumulates this split's partial F @ F^T over its K tiles into g_ref."""
    p = pl.program_id(0)              # K-split (parallel; one per TensorCore)
    k = pl.program_id(1)              # K-tile within the split (reduction)
    gidx = p * kt_per_split + k       # global K-tile index (may overshoot)

    f = feat_ref[...]                 # (N, tk), native dtype
    if needs_mask:
        # Zero the ragged tail of the last K tile and any overshoot tile of an
        # uneven split: edge-block lanes are not guaranteed to be zero-filled.
        col = gidx * tk + jax.lax.broadcasted_iota(jnp.int32, f.shape, 1)
        valid = jnp.logical_and(col < k_total, gidx < num_k_tiles)
        f = jnp.where(valid, f, jnp.zeros_like(f))
    if cast_bf16 and f.dtype == jnp.float32:
        # Optional MXU fast path (biggest win on v5e); accumulation stays f32.
        f = f.astype(jnp.bfloat16)

    # trans_b form: contract the last dim of both operands (no explicit .T).
    g = jax.lax.dot_general(
        f, f,
        dimension_numbers=(((1,), (1,)), ((), ())),
        preferred_element_type=jnp.float32)

    @pl.when(k == 0)
    def _():
        g_ref[...] = g                # first tile: plain store, no zero + RMW

    @pl.when(k > 0)
    def _():
        g_ref[...] += g


def _gram_pallas(features, total_elems, *, cast_bf16=False, _force_tk=None):
    """features: (N, K) -> Gram matrix (N, N) float32 = F F^T / total_elems."""
    N, K = features.shape
    itemsize = jnp.dtype(features.dtype).itemsize
    out_bytes = N * N * 4                       # resident f32 output (1 copy)

    buf_budget, limit_cap = _vmem_budget_bytes()

    # Largest K tile (multiple of 128) keeping double-buffered feature tiles
    # plus the resident output under the per-generation buffer budget.
    max_tk = (buf_budget - out_bytes) // (2 * N * itemsize)
    max_tk = max(128, (max_tk // 128) * 128)

    # Soft cap: aim for >= ~4 K tiles when K is large enough so the DMA stream
    # overlaps the MXU and the reduction can be split across v7x's two
    # TensorCores, while never dropping below 512 lanes/step (step overhead).
    tk_pipeline = max(512, _round_up(_cdiv(K, 4), 128))
    tk = min(max_tk, tk_pipeline)
    if tk >= K:
        tk = K                                   # single full-K tile (any K)
    if _force_tk is not None:                    # test hook
        tk = _force_tk

    num_k_tiles = _cdiv(K, tk)
    needs_mask = (K % tk) != 0

    # Split the K reduction across a leading "parallel" axis (both v7x TCs).
    num_splits = 2 if num_k_tiles >= 2 else 1
    kt_per_split = _cdiv(num_k_tiles, num_splits)
    needs_mask = needs_mask or (num_splits * kt_per_split != num_k_tiles)

    kernel = functools.partial(
        _gram_kernel, k_total=K, tk=tk, kt_per_split=kt_per_split,
        num_k_tiles=num_k_tiles, needs_mask=needs_mask, cast_bf16=cast_bf16)

    vmem_needed = 2 * N * tk * itemsize + 2 * out_bytes + 4 * (1 << 20)
    vmem_limit_bytes = int(
        max(min(max(vmem_needed, 32 * (1 << 20)), limit_cap), vmem_needed))

    cost = pl.CostEstimate(
        flops=2 * N * N * (num_splits * kt_per_split * tk),
        transcendentals=0,
        bytes_accessed=N * K * itemsize + num_splits * out_bytes)

    def feat_index_map(p, k):
        # Clamp so the overshoot step of an uneven split stays in-bounds; its
        # contribution is zero-masked inside the kernel.
        return (0, jnp.minimum(p * kt_per_split + k, num_k_tiles - 1))

    parts = pl.pallas_call(
        kernel,
        out_shape=jax.ShapeDtypeStruct((num_splits, N, N), jnp.float32),
        grid_spec=pltpu.PrefetchScalarGridSpec(
            num_scalar_prefetch=0,
            grid=(num_splits, kt_per_split),
            in_specs=[
                pl.BlockSpec((N, tk), feat_index_map),     # features K-tile
            ],
            # Per-split (N, N) partial, resident across the K axis.
            out_specs=pl.BlockSpec((None, N, N), lambda p, k: (p, 0, 0)),
        ),
        compiler_params=pltpu.CompilerParams(
            dimension_semantics=("parallel", "arbitrary"),
            vmem_limit_bytes=vmem_limit_bytes),
        cost_estimate=cost,
    )(features)

    # Tiny (N, N) epilogue in XLA: combine per-core partials, apply 1/(abcd).
    return jnp.sum(parts, axis=0) * float(1.0 / total_elems)


def gram_matrix_pallas(x, *, cast_bf16=False):
    """Pallas equivalent of PyTorch gram_matrix for NCHW input."""
    a, b, c, d = x.shape
    feats = x.reshape(a * b, c * d)              # keep native dtype
    # TODO(synk): default cast_bf16=True on v5e (compute-bound for N >= ~128)
    # once a matching bf16 tolerance/reference is in place.
    return _gram_pallas(feats, a * b * c * d, cast_bf16=cast_bf16)


def gram_matrix_ref(x):
    """Pure-JAX reference of PyTorch gram_matrix (for correctness checks)."""
    a, b, c, d = x.shape
    feats = x.reshape(a * b, c * d).astype(jnp.float32)
    return (feats @ feats.T) / (a * b * c * d)


class StyleLossPallas:
    """JAX/Pallas analogue of the PyTorch StyleLoss module."""

    def __init__(self, target_feature):
        # `self.target = gram_matrix(target_feature).detach()`
        self.target = jax.lax.stop_gradient(gram_matrix_pallas(target_feature))

    def __call__(self, x):
        G = gram_matrix_pallas(x)
        # MSE over the small (N, N) Gram is trivial; keep it in plain JAX.
        self.loss = jnp.mean((G - self.target) ** 2)
        return x   # forward returns its input unchanged, like the nn.Module


if __name__ == "__main__":
    key = jax.random.PRNGKey(0)
    k1, k2, k3 = jax.random.split(key, 3)

    # Small NCHW feature maps consistent with the module.
    a, b, c, d = 2, 4, 16, 16
    target_feature = jax.random.normal(k1, (a, b, c, d), dtype=jnp.float32)
    x = jax.random.normal(k2, (a, b, c, d), dtype=jnp.float32)

    module = StyleLossPallas(target_feature)
    out = jax.block_until_ready(module(x))
    loss = jax.block_until_ready(module.loss)

    # Correctness check against a pure-JAX reference of the PyTorch math.
    G_ref = gram_matrix_ref(x)
    target_ref = gram_matrix_ref(target_feature)
    loss_ref = jnp.mean((G_ref - target_ref) ** 2)

    assert out.shape == x.shape
    assert jnp.allclose(out, x)
    assert jnp.allclose(module.target, target_ref, rtol=1e-5, atol=1e-6)
    assert jnp.allclose(loss, loss_ref, rtol=1e-5, atol=1e-6), (loss, loss_ref)

    # Extra check: exercise the ragged-K tail mask + dual K-split path by
    # forcing a small K tile on a spatial size that is not a multiple of 128.
    a2, b2, c2, d2 = 2, 3, 13, 17                # N = 6, K = 221
    y = jax.random.normal(k3, (a2, b2, c2, d2), dtype=jnp.float32)
    feats_y = y.reshape(a2 * b2, c2 * d2)
    G_small = jax.block_until_ready(
        _gram_pallas(feats_y, a2 * b2 * c2 * d2, _force_tk=128))
    G_small_ref = gram_matrix_ref(y)
    assert jnp.allclose(G_small, G_small_ref, rtol=1e-5, atol=1e-6)

    print("KERNEL_OK")
</pallas_src>

<mosaic_0001>
module attributes {stable_mosaic.version = 11 : i64} {
  func.func @_gram_kernel(%arg0: i32, %arg1: i32, %arg2: memref<8x256xf32, #tpu.memory_space<vmem>>, %arg3: memref<1x8x8xf32, #tpu.memory_space<vmem>>) attributes {dimension_semantics = [#tpu.dimension_semantics<parallel>, #tpu.dimension_semantics<arbitrary>], iteration_bounds = array<i64: 1, 1>, scalar_prefetch = 0 : i64, scratch_operands = 0 : i64, tpu.core_type = #tpu.core_type<tc>, window_params = [{transform_indices = @transform_0, window_bounds = array<i64: 8, 256>}, {transform_indices = @transform_1, window_bounds = array<i64: 1, 8, 8>}]} {
    %c0 = arith.constant 0 : index
    %c0_0 = arith.constant 0 : index
    %0 = vector.load %arg2[%c0, %c0_0] : memref<8x256xf32, #tpu.memory_space<vmem>>, vector<8x256xf32>
    %cst = arith.constant dense<0.000000e+00> : vector<8x8xf32>
    %1 = tpu.matmul %0, %0, %cst {dimension_numbers = #tpu.dot_dimension_numbers<[1], [1], [0], [0], [0, 0, 1, 0], [], []>} : vector<8x256xf32>, vector<8x256xf32>, vector<8x8xf32> -> vector<8x8xf32>
    %c0_i32 = arith.constant 0 : i32
    %2 = arith.cmpi eq, %arg1, %c0_i32 : i32
    %3 = arith.extui %2 : i1 to i32
    %c0_i32_1 = arith.constant 0 : i32
    %4 = arith.cmpi ne, %3, %c0_i32_1 : i32
    scf.if %4 {
      %c0_4 = arith.constant 0 : index
      %c0_5 = arith.constant 0 : index
      %c0_6 = arith.constant 0 : index
      %8 = vector.load %arg3[%c0_4, %c0_5, %c0_6] : memref<1x8x8xf32, #tpu.memory_space<vmem>>, vector<1x8x8xf32>
      %9 = vector.shape_cast %8 : vector<1x8x8xf32> to vector<8x8xf32>
      %10 = vector.shape_cast %1 : vector<8x8xf32> to vector<1x8x8xf32>
      tpu.vector_store %arg3[%c0_4, %c0_5, %c0_6], %10 {strides = array<i32>} : memref<1x8x8xf32, #tpu.memory_space<vmem>>, vector<1x8x8xf32>,
    } else {
    }
    %c0_i32_2 = arith.constant 0 : i32
    %5 = arith.cmpi sgt, %arg1, %c0_i32_2 : i32
    %6 = arith.extui %5 : i1 to i32
    %c0_i32_3 = arith.constant 0 : i32
    %7 = arith.cmpi ne, %6, %c0_i32_3 : i32
    scf.if %7 {
      %c0_4 = arith.constant 0 : index
      %c0_5 = arith.constant 0 : index
      %c0_6 = arith.constant 0 : index
      %8 = vector.load %arg3[%c0_4, %c0_5, %c0_6] : memref<1x8x8xf32, #tpu.memory_space<vmem>>, vector<1x8x8xf32>
      %9 = vector.shape_cast %8 : vector<1x8x8xf32> to vector<8x8xf32>
      %10 = arith.addf %9, %1 : vector<8x8xf32>
      %c0_7 = arith.constant 0 : index
      %c0_8 = arith.constant 0 : index
      %c0_9 = arith.constant 0 : index
      %11 = vector.load %arg3[%c0_7, %c0_8, %c0_9] : memref<1x8x8xf32, #tpu.memory_space<vmem>>, vector<1x8x8xf32>
      %12 = vector.shape_cast %11 : vector<1x8x8xf32> to vector<8x8xf32>
      %13 = vector.shape_cast %10 : vector<8x8xf32> to vector<1x8x8xf32>
      tpu.vector_store %arg3[%c0_7, %c0_8, %c0_9], %13 {strides = array<i32>} : memref<1x8x8xf32, #tpu.memory_space<vmem>>, vector<1x8x8xf32>,
    } else {
    }
    return
  }
  func.func @transform_0(%arg0: i32, %arg1: i32) -> (i32, i32) {
    %c1_i32 = arith.constant 1 : i32
    %0 = arith.muli %arg0, %c1_i32 : i32
    %1 = arith.addi %0, %arg1 : i32
    %c0_i32 = arith.constant 0 : i32
    %2 = arith.minsi %1, %c0_i32 : i32
    %c0_i32_0 = arith.constant 0 : i32
    %c0_i32_1 = arith.constant 0 : i32
    return %c0_i32_0, %2 : i32, i32
  }
  func.func @transform_1(%arg0: i32, %arg1: i32) -> (i32, i32, i32) {
    %c0_i32 = arith.constant 0 : i32
    %c0_i32_0 = arith.constant 0 : i32
    %c0_i32_1 = arith.constant 0 : i32
    return %arg0, %c0_i32, %c0_i32_0 : i32, i32, i32
  }
}

</mosaic_0001>

<llo_original>
// kernel: tpu_custom_call.1
$region0: #{tpu_custom_call.1}
  #allocation0 [shape = 'u32[]', space=smem, size = 0x4, offset = 0x4, fixed_abs, tag = 'smem constant byte address 0x4 - core index']
  #allocation1 [shape = 'u32[144,128]{1,0:T(1,128)}', space=vmem, size = 0x12000, scoped, tag = 'internal scratch']
  %s0 = inlined_call_operand.hbm [shape: f32[8,256], index: 0, kind: input, shape index: {}]
  %s1 = inlined_call_operand.hbm [shape: f32[1,8,8], index: 1, kind: output, shape index: {}]
  %s2 = sld [smem:[#allocation0]]
  $region26: #{tpu_custom_call.1} parent=0
    _
  %s4 = ssub.s32 1, %s2
  %s5 = scalar_select 0, %s4, %s2
  $region1: #{tpu_custom_call.1} parent=0
    #allocation2 [shape = 'u8[8192]{0}', space=vmem, size = 0x2000, scoped, tag = 'input window, operand 0, single buffered']
    #allocation3 [shape = 's32[1]{0}', space=sflag, size = 0x4, scoped, tag = 'scoped memory for tpu_custom_call.1']
    #allocation4 [shape = 's32[1]{0}', space=sflag, size = 0x4, scoped, tag = 'scoped memory for tpu_custom_call.1']
    #allocation5 [shape = 'u8[4096]{0}', space=vmem, size = 0x1000, scoped, tag = 'output window, operand 0, single buffered']
    %6 = vsyncpa [#allocation3], 0
    %7 = vsyncpa [#allocation4], 0
    // Predicated region
    $region2: #{tpu_custom_call.1} parent=1 // pred_check
      _
    $region3: #{tpu_custom_call.1} parent=1 // pred_check_branch
      %9 = sbr.rel (0) target = $region5
    $region4: #{tpu_custom_call.1} parent=1 // pred_region
      %s10 = sadd.s32 0, 0
      %p11 = scmp.lt.s32.totalorder %s10, 0
      %s12 = scalar_select %p11, %s10, 0
      %s13 = smul.u32 2, %s12
      %s15 = ssub.s32 256, 256
      %16 = vsyncadd [#allocation3], %s15
      %s17 = smul.addr %s13, 128
      %s18 = scalar_lea.hbm %s0, %s17
      %s20 = sshll.u32 [#allocation2], 4
      %s21 = int_to_ptr.vmem [resolvable:$true] %s20
      %23 = dma.hbm_to_vmem [thread:$0]  %s18, 256, %s21, [#allocation3]
    $region5: #{tpu_custom_call.1} parent=1 // pred_fallthru
      _
    // Predicated region
    $region6: #{tpu_custom_call.1} parent=1 // pred_check
      _
    $region7: #{tpu_custom_call.1} parent=1 // pred_check_branch
      %25 = sbr.rel (0) target = $region9
    $region8: #{tpu_custom_call.1} parent=1 // pred_region
      %26 = dma.done [#allocation3], 256
    $region9: #{tpu_custom_call.1} parent=1 // pred_fallthru
      _
    %s27 = sadd.s32 0, 0
    %p28 = scmp.lt.s32.totalorder %s27, 0
    %s29 = scalar_select %p28, %s27, 0
    %s30 = smul.u32 2, %s29
    %v31 = vld [vmem:[#allocation2] sm:$0xff]
    %v32 = vld [vmem:[#allocation2 + $0x8] sm:$0xff]
    %33 = vmatprep.subr.mxu0 0.0
    %34 = vmatpush1.xpose.msra.mxu0 0.0
    %35 = vmatprep.subr.mxu0 0.0
    %36 = vmatpush1.xpose.msra.mxu0 0.0
    %37 = vmatprep.subr.mxu0 0.0
    %38 = vmatpush1.xpose.msra.mxu0 0.0
    %39 = vmatprep.subr.mxu0 0.0
    %40 = vmatpush1.xpose.msra.mxu0 0.0
    %41 = vmatprep.subr.mxu0 0.0
    %42 = vmatpush1.xpose.msra.mxu0 0.0
    %43 = vmatprep.subr.mxu0 0.0
    %44 = vmatpush1.xpose.msra.mxu0 0.0
    %45 = vmatprep.subr.mxu0 0.0
    %46 = vmatpush1.xpose.msra.mxu0 0.0
    %47 = vmatprep.subr.mxu0 0.0
    %48 = vmatpush1.xpose.msra.mxu0 0.0
    %49 = vmatprep.subr.mxu0 0.0
    %50 = vmatpush1.xpose.msra.mxu0 0.0
    %51 = vmatprep.subr.mxu0 0.0
    %52 = vmatpush1.xpose.msra.mxu0 0.0
    %53 = vmatprep.subr.mxu0 0.0
    %54 = vmatpush1.xpose.msra.mxu0 0.0
    %55 = vmatprep.subr.mxu0 0.0
    %56 = vmatpush1.xpose.msra.mxu0 0.0
    %57 = vmatprep.subr.mxu0 0.0
    %58 = vmatpush1.xpose.msra.mxu0 0.0
    %59 = vmatprep.subr.mxu0 0.0
    %60 = vmatpush1.xpose.msra.mxu0 0.0
    %61 = vmatprep.subr.mxu0 0.0
    %62 = vmatpush1.xpose.msra.mxu0 0.0
    %63 = vmatprep.subr.mxu0 %v32
    %64 = vmatpush1.xpose.msra.mxu0 %v31
    %65 = vmatprep.subr.mxu0 0.0
    %66 = vmatpush2.xpose.msra.mxu0 0.0
    %67 = vmatprep.subr.mxu0 0.0
    %68 = vmatpush2.xpose.msra.mxu0 0.0
    %69 = vmatprep.subr.mxu0 0.0
    %70 = vmatpush2.xpose.msra.mxu0 0.0
    %71 = vmatprep.subr.mxu0 0.0
    %72 = vmatpush2.xpose.msra.mxu0 0.0
    %73 = vmatprep.subr.mxu0 0.0
    %74 = vmatpush2.xpose.msra.mxu0 0.0
    %75 = vmatprep.subr.mxu0 0.0
    %76 = vmatpush2.xpose.msra.mxu0 0.0
    %77 = vmatprep.subr.mxu0 0.0
    %78 = vmatpush2.xpose.msra.mxu0 0.0
    %79 = vmatprep.subr.mxu0 0.0
    %80 = vmatpush2.xpose.msra.mxu0 0.0
    %81 = vmatprep.subr.mxu0 0.0
    %82 = vmatpush2.xpose.msra.mxu0 0.0
    %83 = vmatprep.subr.mxu0 0.0
    %84 = vmatpush2.xpose.msra.mxu0 0.0
    %85 = vmatprep.subr.mxu0 0.0
    %86 = vmatpush2.xpose.msra.mxu0 0.0
    %87 = vmatprep.subr.mxu0 0.0
    %88 = vmatpush2.xpose.msra.mxu0 0.0
    %89 = vmatprep.subr.mxu0 0.0
    %90 = vmatpush2.xpose.msra.mxu0 0.0
    %91 = vmatprep.subr.mxu0 0.0
    %92 = vmatpush2.xpose.msra.mxu0 0.0
    %93 = vmatprep.subr.mxu0 0.0
    %94 = vmatpush2.xpose.msra.mxu0 0.0
    %95 = vmatprep.subr.mxu0 0.0
    %96 = vmatpush2.xpose.msra.mxu0 0.0
    %97 = vmatprep.mubr.f32.mxu0 %v32
    %98 = vmatmul.mubr.f32.gmra.mxu0 %v31
    %v99 = vpop.f32.mrf.mxu0
    %v100 = vadd.f32 0.0, %v99
    %v101 = vpop.f32.mrf.mxu0
    %102 = vdwg.mxu0
    %p103 = scmp.eq.s32.totalorder 0, 0
    // Predicated region
    $region10: #{tpu_custom_call.1} parent=1 // pred_check
      %p104 = pneg %p103
    $region11: #{tpu_custom_call.1} parent=1 // pred_check_branch
      %106 = sbr.rel (%p104) target = $region13
    $region12: #{tpu_custom_call.1} parent=1 // pred_region
      %vm107 = vcmask 64512
      %108 = vst.msk [vmem:[#allocation5] sm:$0xff] %vm107, %v100
    $region13: #{tpu_custom_call.1} parent=1 // pred_fallthru
      _
    %p109 = scmp.gt.s32.totalorder 0, 0
    // Predicated region
    $region14: #{tpu_custom_call.1} parent=1 // pred_check
      %p110 = pneg %p109
    $region15: #{tpu_custom_call.1} parent=1 // pred_check_branch
      %112 = sbr.rel (%p110) target = $region17
    $region16: #{tpu_custom_call.1} parent=1 // pred_region
      %v113 = vld [vmem:[#allocation5] sm:$0xff]
      %v114 = vadd.f32 %v113, %v100
      %vm115 = vcmask 64512
      %116 = vst.msk [vmem:[#allocation5] sm:$0xff] %vm115, %v114
    $region17: #{tpu_custom_call.1} parent=1 // pred_fallthru
      _
    // Predicated region
    $region18: #{tpu_custom_call.1} parent=1 // pred_check
      _
    $region19: #{tpu_custom_call.1} parent=1 // pred_check_branch
      %118 = sbr.rel (0) target = $region21
    $region20: #{tpu_custom_call.1} parent=1 // pred_region
      %s120 = ssub.s32 128, 128
      %121 = vsyncadd [#allocation4], %s120
      %s123 = sshll.u32 [#allocation5], 4
      %s124 = int_to_ptr.vmem [resolvable:$true] %s123
      %126 = dma.vmem_to_hbm [thread:$0]  %s124, 128, %s1, [#allocation4]
    $region21: #{tpu_custom_call.1} parent=1 // pred_fallthru
      _
    // Predicated region
    $region22: #{tpu_custom_call.1} parent=1 // pred_check
      _
    $region23: #{tpu_custom_call.1} parent=1 // pred_check_branch
      %128 = sbr.rel (0) target = $region25
    $region24: #{tpu_custom_call.1} parent=1 // pred_region
      %129 = dma.done [#allocation4], 128
    $region25: #{tpu_custom_call.1} parent=1 // pred_fallthru
      _
    %130 = vsyncpa [#allocation3], 1
    %131 = vsyncpa [#allocation4], 1

</llo_original>
